<compile_context>
chip_gen: v7x
topology: tpu7x:2x2x1
jax: 0.10.0
libtpu: 0.0.40
codegen_flags: <defaults>
</compile_context>

<pallas_src>
import functools

import jax
import jax.numpy as jnp
import numpy as np
from jax.experimental import pallas as pl
from jax.experimental.pallas import tpu as pltpu


# ----------------------------------------------------------------------------
# Pallas kernel: one module per grid step (batch-free).
# ----------------------------------------------------------------------------
def _axial_pe_kernel(w0_ref, w1_ref, out_ref, *, s1, rows_emb, add_zero_row):
    # w0_ref : (1, S0, D)   slow-axis table for this module
    # w1_ref : (1, S1, D)   fast-axis table for this module
    # out_ref: (1, per_chunk, D)
    d = out_ref.shape[-1]
    w1 = w1_ref[0]                      # (S1, D)
    n_full = rows_emb // s1
    rem = rows_emb % s1

    # Static (trace-time unrolled) loop over S1-row blocks:
    #   out[i*S1 : (i+1)*S1] = w0[i] (sublane-broadcast) + w1
    # Avoids the (S0, S1, D) intermediate and the reshape/relayout.
    for i in range(n_full):
        out_ref[0, pl.ds(i * s1, s1), :] = (
            w0_ref[0, pl.ds(i, 1), :] + w1).astype(out_ref.dtype)
    if rem:
        out_ref[0, pl.ds(n_full * s1, rem), :] = (
            w0_ref[0, pl.ds(n_full, 1), :] + w1[:rem, :]).astype(out_ref.dtype)
    if add_zero_row:
        # Branch 1: fused zero EOS row (was a JAX-side concat before).
        out_ref[0, pl.ds(rows_emb, 1), :] = jnp.zeros((1, d), out_ref.dtype)


def axial_positional_embedding_pallas(w0, w1, per_chunk, add_zero_row, out_dtype):
    """Returns pos embeddings of shape (num, per_chunk, D) (batch-free)."""
    num, s0, d = w0.shape
    _, s1, _ = w1.shape
    rows_emb = per_chunk - 1 if add_zero_row else per_chunk
    assert 0 < rows_emb <= s0 * s1, "chunk length exceeds axial grid size"

    kernel = functools.partial(
        _axial_pe_kernel, s1=s1, rows_emb=rows_emb, add_zero_row=add_zero_row)
    return pl.pallas_call(
        kernel,
        out_shape=jax.ShapeDtypeStruct((num, per_chunk, d), out_dtype),
        grid=(num,),
        in_specs=[
            pl.BlockSpec((1, s0, d), lambda m: (m, 0, 0)),
            pl.BlockSpec((1, s1, d), lambda m: (m, 0, 0)),
        ],
        out_specs=pl.BlockSpec((1, per_chunk, d), lambda m: (m, 0, 0)),
        compiler_params=pltpu.CompilerParams(
            dimension_semantics=("parallel",)),
    )(w0, w1)


# ----------------------------------------------------------------------------
# Module wrapper reproducing AxialPositionalEmbeddingList.forward semantics.
# ----------------------------------------------------------------------------
class AxialPositionalEmbeddingListPallas:
    def __init__(self, dim=512, num=None, axial_shape=(), key=None):
        if num is None:
            num = axial_shape[0]
            axial_shape = axial_shape[1:]
        assert len(axial_shape) == 2, "this implementation assumes a 2-axis axial shape"
        self.dim = dim
        self.num = num
        self.axial_shape = tuple(axial_shape)
        self.chunk_size = int(np.prod(axial_shape))
        self.seq_len = num * self.chunk_size

        # Deterministic parameter init (PyTorch uses N(0, 1) per axial table).
        if key is None:
            key = jax.random.PRNGKey(0)
        k0, k1 = jax.random.split(key)
        s0, s1 = self.axial_shape
        # One (S_axis, D) table per module, per axis (summed axial embedding).
        self.w0 = jax.random.normal(k0, (num, s0, dim), dtype=jnp.float32)
        self.w1 = jax.random.normal(k1, (num, s1, dim), dtype=jnp.float32)

    def __call__(self, emb):
        b, t, d = emb.shape
        assert d == self.dim
        assert t % self.num == 0, "sequence length must be divisible by num"
        per_chunk = t // self.num
        add_zero_row = t > self.seq_len  # branch 1: each chunk carries an EOS slot

        # Batch-free (num, per_chunk, D) pos, already cast to emb.dtype.
        pos = axial_positional_embedding_pallas(
            self.w0, self.w1, per_chunk, add_zero_row, emb.dtype)
        # 'b t n d -> b (t n) d' with an identical value per batch element:
        pos = pos.reshape(self.num * per_chunk, d)
        return jnp.broadcast_to(pos[None], (b, self.num * per_chunk, d))


# ----------------------------------------------------------------------------
# Pure-JAX/NumPy reference for verification.
# ----------------------------------------------------------------------------
def _reference(module, emb):
    b, t, d = emb.shape
    s0, s1 = module.axial_shape
    per_mod = []
    for m in range(module.num):
        p = (np.asarray(module.w0[m])[:, None, :] +
             np.asarray(module.w1[m])[None, :, :]).reshape(s0 * s1, d)
        per_mod.append(p.astype(np.float32))
    per_mod = np.stack(per_mod, axis=0)                         # (num, chunk, d)

    per_chunk = t // module.num
    if t > module.seq_len:
        p = per_mod[:, : per_chunk - 1, :]
        p = np.concatenate([p, np.zeros((module.num, 1, d), np.float32)], axis=1)
    else:
        p = per_mod[:, :per_chunk, :]
    p = p.reshape(module.num * per_chunk, d)
    return np.broadcast_to(p[None], (b, p.shape[0], d)).astype(np.asarray(emb).dtype)


if __name__ == "__main__":
    key = jax.random.PRNGKey(0)
    dim, num, axial_shape, batch = 32, 2, (4, 4), 2

    module = AxialPositionalEmbeddingListPallas(
        dim=dim, num=num, axial_shape=axial_shape, key=key)

    # Branch 2 (emb.shape[1] == seq_len): T = num * prod(axial_shape) = 32
    k_e1, k_e2 = jax.random.split(jax.random.PRNGKey(1))
    emb_a = jax.random.normal(k_e1, (batch, module.seq_len, dim), dtype=jnp.float32)
    out_a = jax.block_until_ready(module(emb_a))
    np.testing.assert_allclose(np.asarray(out_a), _reference(module, emb_a),
                               rtol=1e-6, atol=1e-6)
    assert out_a.shape == (batch, module.seq_len, dim)

    # Branch 1 (emb.shape[1] > seq_len): each chunk carries one extra token.
    emb_b = jax.random.normal(k_e2, (batch, module.seq_len + num, dim),
                              dtype=jnp.float32)
    out_b = jax.block_until_ready(module(emb_b))
    np.testing.assert_allclose(np.asarray(out_b), _reference(module, emb_b),
                               rtol=1e-6, atol=1e-6)
    assert out_b.shape == (batch, module.seq_len + num, dim)

    print("KERNEL_OK")
</pallas_src>

<mosaic_0001>
module attributes {stable_mosaic.version = 11 : i64} {
  func.func @_axial_pe_kernel(%arg0: i32, %arg1: memref<1x4x32xf32, #tpu.memory_space<vmem>>, %arg2: memref<1x4x32xf32, #tpu.memory_space<vmem>>, %arg3: memref<1x16x32xf32, #tpu.memory_space<vmem>>) attributes {dimension_semantics = [#tpu.dimension_semantics<parallel>], iteration_bounds = array<i64: 2>, scalar_prefetch = 0 : i64, scratch_operands = 0 : i64, tpu.core_type = #tpu.core_type<tc>, window_params = [{transform_indices = @transform_0, window_bounds = array<i64: 1, 4, 32>}, {transform_indices = @transform_1, window_bounds = array<i64: 1, 4, 32>}, {transform_indices = @transform_2, window_bounds = array<i64: 1, 16, 32>}]} {
    %c0 = arith.constant 0 : index
    %c0_0 = arith.constant 0 : index
    %c0_1 = arith.constant 0 : index
    %0 = vector.load %arg2[%c0, %c0_0, %c0_1] : memref<1x4x32xf32, #tpu.memory_space<vmem>>, vector<1x4x32xf32>
    %1 = vector.shape_cast %0 : vector<1x4x32xf32> to vector<4x32xf32>
    %c0_2 = arith.constant 0 : index
    %c0_3 = arith.constant 0 : index
    %c0_4 = arith.constant 0 : index
    %2 = vector.load %arg1[%c0_2, %c0_3, %c0_4] : memref<1x4x32xf32, #tpu.memory_space<vmem>>, vector<1x1x32xf32>
    %3 = vector.shape_cast %2 : vector<1x1x32xf32> to vector<1x32xf32>
    %4 = vector.broadcast %3 : vector<1x32xf32> to vector<4x32xf32>
    %5 = arith.addf %4, %1 : vector<4x32xf32>
    %c0_5 = arith.constant 0 : index
    %c0_6 = arith.constant 0 : index
    %c0_7 = arith.constant 0 : index
    %6 = vector.load %arg3[%c0_5, %c0_6, %c0_7] : memref<1x16x32xf32, #tpu.memory_space<vmem>>, vector<1x4x32xf32>
    %7 = vector.shape_cast %6 : vector<1x4x32xf32> to vector<4x32xf32>
    %8 = vector.shape_cast %5 : vector<4x32xf32> to vector<1x4x32xf32>
    tpu.vector_store %arg3[%c0_5, %c0_6, %c0_7], %8 {strides = array<i32>} : memref<1x16x32xf32, #tpu.memory_space<vmem>>, vector<1x4x32xf32>,
    %c0_8 = arith.constant 0 : index
    %c1 = arith.constant 1 : index
    %c0_9 = arith.constant 0 : index
    %9 = vector.load %arg1[%c0_8, %c1, %c0_9] : memref<1x4x32xf32, #tpu.memory_space<vmem>>, vector<1x1x32xf32>
    %10 = vector.shape_cast %9 : vector<1x1x32xf32> to vector<1x32xf32>
    %11 = vector.broadcast %10 : vector<1x32xf32> to vector<4x32xf32>
    %12 = arith.addf %11, %1 : vector<4x32xf32>
    %c0_10 = arith.constant 0 : index
    %c4 = arith.constant 4 : index
    %c0_11 = arith.constant 0 : index
    %13 = vector.load %arg3[%c0_10, %c4, %c0_11] : memref<1x16x32xf32, #tpu.memory_space<vmem>>, vector<1x4x32xf32>
    %14 = vector.shape_cast %13 : vector<1x4x32xf32> to vector<4x32xf32>
    %15 = vector.shape_cast %12 : vector<4x32xf32> to vector<1x4x32xf32>
    tpu.vector_store %arg3[%c0_10, %c4, %c0_11], %15 {strides = array<i32>} : memref<1x16x32xf32, #tpu.memory_space<vmem>>, vector<1x4x32xf32>,
    %c0_12 = arith.constant 0 : index
    %c2 = arith.constant 2 : index
    %c0_13 = arith.constant 0 : index
    %16 = vector.load %arg1[%c0_12, %c2, %c0_13] : memref<1x4x32xf32, #tpu.memory_space<vmem>>, vector<1x1x32xf32>
    %17 = vector.shape_cast %16 : vector<1x1x32xf32> to vector<1x32xf32>
    %18 = vector.broadcast %17 : vector<1x32xf32> to vector<4x32xf32>
    %19 = arith.addf %18, %1 : vector<4x32xf32>
    %c0_14 = arith.constant 0 : index
    %c8 = arith.constant 8 : index
    %c0_15 = arith.constant 0 : index
    %20 = vector.load %arg3[%c0_14, %c8, %c0_15] : memref<1x16x32xf32, #tpu.memory_space<vmem>>, vector<1x4x32xf32>
    %21 = vector.shape_cast %20 : vector<1x4x32xf32> to vector<4x32xf32>
    %22 = vector.shape_cast %19 : vector<4x32xf32> to vector<1x4x32xf32>
    tpu.vector_store %arg3[%c0_14, %c8, %c0_15], %22 {strides = array<i32>} : memref<1x16x32xf32, #tpu.memory_space<vmem>>, vector<1x4x32xf32>,
    %c0_16 = arith.constant 0 : index
    %c3 = arith.constant 3 : index
    %c0_17 = arith.constant 0 : index
    %23 = vector.load %arg1[%c0_16, %c3, %c0_17] : memref<1x4x32xf32, #tpu.memory_space<vmem>>, vector<1x1x32xf32>
    %24 = vector.shape_cast %23 : vector<1x1x32xf32> to vector<1x32xf32>
    %25 = vector.broadcast %24 : vector<1x32xf32> to vector<4x32xf32>
    %26 = arith.addf %25, %1 : vector<4x32xf32>
    %c0_18 = arith.constant 0 : index
    %c12 = arith.constant 12 : index
    %c0_19 = arith.constant 0 : index
    %27 = vector.load %arg3[%c0_18, %c12, %c0_19] : memref<1x16x32xf32, #tpu.memory_space<vmem>>, vector<1x4x32xf32>
    %28 = vector.shape_cast %27 : vector<1x4x32xf32> to vector<4x32xf32>
    %29 = vector.shape_cast %26 : vector<4x32xf32> to vector<1x4x32xf32>
    tpu.vector_store %arg3[%c0_18, %c12, %c0_19], %29 {strides = array<i32>} : memref<1x16x32xf32, #tpu.memory_space<vmem>>, vector<1x4x32xf32>,
    return
  }
  func.func @transform_0(%arg0: i32) -> (i32, i32, i32) {
    %c0_i32 = arith.constant 0 : i32
    %c0_i32_0 = arith.constant 0 : i32
    %c0_i32_1 = arith.constant 0 : i32
    return %arg0, %c0_i32, %c0_i32_0 : i32, i32, i32
  }
  func.func @transform_1(%arg0: i32) -> (i32, i32, i32) {
    %c0_i32 = arith.constant 0 : i32
    %c0_i32_0 = arith.constant 0 : i32
    %c0_i32_1 = arith.constant 0 : i32
    return %arg0, %c0_i32, %c0_i32_0 : i32, i32, i32
  }
  func.func @transform_2(%arg0: i32) -> (i32, i32, i32) {
    %c0_i32 = arith.constant 0 : i32
    %c0_i32_0 = arith.constant 0 : i32
    %c0_i32_1 = arith.constant 0 : i32
    return %arg0, %c0_i32, %c0_i32_0 : i32, i32, i32
  }
}

</mosaic_0001>

<llo_original>
// kernel: tpu_custom_call.1
$region0: #{tpu_custom_call.1}
  #allocation0 [shape = 'u32[]', space=smem, size = 0x4, offset = 0x4, fixed_abs, tag = 'smem constant byte address 0x4 - core index']
  #allocation1 [shape = 'u32[144,128]{1,0:T(1,128)}', space=vmem, size = 0x12000, scoped, tag = 'internal scratch']
  %s0 = inlined_call_operand.hbm [shape: f32[2,4,32], index: 0, kind: input, shape index: {}]
  %s1 = inlined_call_operand.hbm [shape: f32[2,4,32], index: 1, kind: input, shape index: {}]
  %s2 = inlined_call_operand.hbm [shape: f32[2,16,32], index: 2, kind: output, shape index: {}]
  %s3 = sld [smem:[#allocation0]]
  $region49: #{tpu_custom_call.1} parent=0
    _
  %s5 = ssub.s32 1, %s3
  %s6 = scalar_select 0, %s5, %s3
  $region1: #{tpu_custom_call.1} parent=0
    #allocation2 [shape = 'u8[4096]{0}', space=vmem, size = 0x1000, scoped, tag = 'input window, operand 0']
    #allocation3 [shape = 's32[2]{0}', space=sflag, size = 0x8, scoped, tag = 'scoped memory for tpu_custom_call.1']
    #allocation4 [shape = 's32[2]{0}', space=sflag, size = 0x8, scoped, tag = 'scoped memory for tpu_custom_call.1']
    #allocation5 [shape = 'u8[4096]{0}', space=vmem, size = 0x1000, scoped, tag = 'input window, operand 1']
    #allocation6 [shape = 's32[2]{0}', space=sflag, size = 0x8, scoped, tag = 'scoped memory for tpu_custom_call.1']
    #allocation7 [shape = 'u8[16384]{0}', space=vmem, size = 0x4000, scoped, tag = 'output window, operand 0']
    %7 = vsyncpa [#allocation3], 0
    %s8 = scalar_lea.sflag [#allocation3], 1
    %9 = vsyncpa %s8, 0
    %10 = vsyncpa [#allocation6], 0
    %s11 = scalar_lea.sflag [#allocation6], 1
    %12 = vsyncpa %s11, 0
    %13 = vsyncpa [#allocation4], 0
    %s14 = scalar_lea.sflag [#allocation4], 1
    %15 = vsyncpa %s14, 0
    loop: start=0, step=1, limit=4
    $region2: #{tpu_custom_call.1} parent=1 // loop_pre_header
      _
    $region3: #{tpu_custom_call.1} parent=1 // loop_header
      %s17 = sphi 0, %s21
      %p18 = scmp.ge.s32.totalorder %s17, 4
      %s27 = sphi 0, %s29
      %s30 = sphi 0, %s27
      %s31 = sphi 0, %s30
      %s47 = sphi 0, %s31
      %s53 = sphi 0, %s55
      %s56 = sphi 0, %s53
      %s57 = sphi 0, %s56
      %s73 = sphi 0, %s57
      %s79 = sphi 0, %s81
      %s82 = sphi 0, %s79
      %s83 = sphi 0, %s82
      %s99 = sphi 0, %s83
    $region4: #{tpu_custom_call.1} parent=1 // loop_header_branch
      %20 = sbr.rel (%p18) target = $region8
    $region5: #{tpu_custom_call.1} parent=1 // loop_body
      %s22 = ssub.s32 %s17, 1
      %s23 = ssub.s32 %s17, 2
      %s24 = sadd.s32 %s17, 1
      %s25 = ssub.s32 %s17, %s24
      %p26 = scmp.eq.s32.totalorder %s25, 0
      %s28 = sadd.s32 %s27, 1
      %s29 = scalar_select %p26, %s27, %s28
      %p32 = pneg %p26
      %p33 = scmp.eq.s32.totalorder %s17, 1
      %p34 = por %p32, %p33
      %p35 = scmp.ne.s32.totalorder %s27, %s30
      %p36 = scmp.eq.s32.totalorder %s17, 0
      %p37 = por %p35, %p36
      %p38 = scmp.ne.s32.totalorder %s27, %s30
      %p39 = scmp.eq.s32.totalorder %s22, 1
      %p40 = por %p38, %p39
      %p41 = scmp.ne.s32.totalorder %s30, %s31
      %p42 = scmp.eq.s32.totalorder %s22, 0
      %p43 = por %p41, %p42
      %p44 = scmp.ne.s32.totalorder %s30, %s31
      %p45 = scmp.eq.s32.totalorder %s23, 1
      %p46 = por %p44, %p45
      %p48 = scmp.ne.s32.totalorder %s31, %s47
      %p49 = scmp.eq.s32.totalorder %s23, 0
      %p50 = por %p48, %p49
      %s51 = ssub.s32 %s17, %s24
      %p52 = scmp.eq.s32.totalorder %s51, 0
      %s54 = sadd.s32 %s53, 1
      %s55 = scalar_select %p52, %s53, %s54
      %p58 = pneg %p52
      %p59 = scmp.eq.s32.totalorder %s17, 1
      %p60 = por %p58, %p59
      %p61 = scmp.ne.s32.totalorder %s53, %s56
      %p62 = scmp.eq.s32.totalorder %s17, 0
      %p63 = por %p61, %p62
      %p64 = scmp.ne.s32.totalorder %s53, %s56
      %p65 = scmp.eq.s32.totalorder %s22, 1
      %p66 = por %p64, %p65
      %p67 = scmp.ne.s32.totalorder %s56, %s57
      %p68 = scmp.eq.s32.totalorder %s22, 0
      %p69 = por %p67, %p68
      %p70 = scmp.ne.s32.totalorder %s56, %s57
      %p71 = scmp.eq.s32.totalorder %s23, 1
      %p72 = por %p70, %p71
      %p74 = scmp.ne.s32.totalorder %s57, %s73
      %p75 = scmp.eq.s32.totalorder %s23, 0
      %p76 = por %p74, %p75
      %s77 = ssub.s32 %s17, %s24
      %p78 = scmp.eq.s32.totalorder %s77, 0
      %s80 = sadd.s32 %s79, 1
      %s81 = scalar_select %p78, %s79, %s80
      %p84 = pneg %p78
      %p85 = scmp.eq.s32.totalorder %s17, 1
      %p86 = por %p84, %p85
      %p87 = scmp.ne.s32.totalorder %s79, %s82
      %p88 = scmp.eq.s32.totalorder %s17, 0
      %p89 = por %p87, %p88
      %p90 = scmp.ne.s32.totalorder %s79, %s82
      %p91 = scmp.eq.s32.totalorder %s22, 1
      %p92 = por %p90, %p91
      %p93 = scmp.ne.s32.totalorder %s82, %s83
      %p94 = scmp.eq.s32.totalorder %s22, 0
      %p95 = por %p93, %p94
      %p96 = scmp.ne.s32.totalorder %s82, %s83
      %p97 = scmp.eq.s32.totalorder %s23, 1
      %p98 = por %p96, %p97
      %p100 = scmp.ne.s32.totalorder %s83, %s99
      %p101 = scmp.eq.s32.totalorder %s23, 0
      %p102 = por %p100, %p101
      %p103 = scmp.le.s32.totalorder 1, %s17
      %p104 = scmp.lt.s32.totalorder %s17, 3
      %p105 = pnand %p103, %p104
      %p106 = pneg %p105
      // Predicated region
      $region9: #{tpu_custom_call.1} parent=5 // pred_check
        _
      $region10: #{tpu_custom_call.1} parent=5 // pred_check_branch
        %108 = sbr.rel (%p105) target = $region12
      $region11: #{tpu_custom_call.1} parent=5 // pred_region
        %s109 = ssub.s32 %s17, 1
      $region12: #{tpu_custom_call.1} parent=5 // pred_fallthru
        _
      %p110 = scmp.lt.s32.totalorder %s17, 2
      // Predicated region
      $region13: #{tpu_custom_call.1} parent=5 // pred_check
        %p111 = pneg %p110
      $region14: #{tpu_custom_call.1} parent=5 // pred_check_branch
        %113 = sbr.rel (%p111) target = $region16
      $region15: #{tpu_custom_call.1} parent=5 // pred_region
        // Predicated region
        $region17: #{tpu_custom_call.1} parent=15 // pred_check
          %p114 = pneg %p37
        $region18: #{tpu_custom_call.1} parent=15 // pred_check_branch
          %116 = sbr.rel (%p114) target = $region20
        $region19: #{tpu_custom_call.1} parent=15 // pred_region
          %s117 = sand.u32 %s27, 1
          %s118 = scalar_lea.sflag [#allocation3], %s117
          %s119 = sand.u32 %s27, 1
          %s120 = smul.addr %s119, 4
          %s121 = scalar_lea.vmem [#allocation2], %s120
          %s123 = ssub.s32 64, 64
          %124 = vsyncadd %s118, %s123
          %s125 = smul.addr %s17, 64
          %s126 = scalar_lea.hbm %s0, %s125
          %s128 = sshll.u32 %s121, 4
          %s129 = int_to_ptr.vmem [resolvable:$true] %s128
          %131 = dma.hbm_to_vmem [thread:$0]  %s126, 64, %s129, %s118
        $region20: #{tpu_custom_call.1} parent=15 // pred_fallthru
          _
        // Predicated region
        $region21: #{tpu_custom_call.1} parent=15 // pred_check
          %p132 = pneg %p63
        $region22: #{tpu_custom_call.1} parent=15 // pred_check_branch
          %134 = sbr.rel (%p132) target = $region24
        $region23: #{tpu_custom_call.1} parent=15 // pred_region
          %s135 = sand.u32 %s53, 1
          %s136 = scalar_lea.sflag [#allocation6], %s135
          %s137 = sand.u32 %s53, 1
          %s138 = smul.addr %s137, 4
          %s139 = scalar_lea.vmem [#allocation5], %s138
          %s141 = ssub.s32 64, 64
          %142 = vsyncadd %s136, %s141
          %s143 = smul.addr %s17, 64
          %s144 = scalar_lea.hbm %s1, %s143
          %s146 = sshll.u32 %s139, 4
          %s147 = int_to_ptr.vmem [resolvable:$true] %s146
          %149 = dma.hbm_to_vmem [thread:$0]  %s144, 64, %s147, %s136
        $region24: #{tpu_custom_call.1} parent=15 // pred_fallthru
          _
      $region16: #{tpu_custom_call.1} parent=5 // pred_fallthru
        _
      %p150 = scmp.le.s32.totalorder 1, %s17
      %p151 = scmp.lt.s32.totalorder %s17, 3
      %p152 = pnand %p150, %p151
      %p153 = pneg %p152
      // Predicated region
      $region25: #{tpu_custom_call.1} parent=5 // pred_check
        _
      $region26: #{tpu_custom_call.1} parent=5 // pred_check_branch
        %155 = sbr.rel (%p152) target = $region28
      $region27: #{tpu_custom_call.1} parent=5 // pred_region
        %s156 = ssub.s32 %s17, 1
        %s157 = sand.u32 %s30, 1
        %s158 = scalar_lea.sflag [#allocation3], %s157
        %s159 = sand.u32 %s30, 1
        %s160 = smul.addr %s159, 4
        %s161 = scalar_lea.vmem [#allocation2], %s160
        // Predicated region
        $region29: #{tpu_custom_call.1} parent=27 // pred_check
          %p162 = pneg %p43
        $region30: #{tpu_custom_call.1} parent=27 // pred_check_branch
          %164 = sbr.rel (%p162) target = $region32
        $region31: #{tpu_custom_call.1} parent=27 // pred_region
          %165 = dma.done %s158, 64
        $region32: #{tpu_custom_call.1} parent=27 // pred_fallthru
          _
        %s166 = sand.u32 %s56, 1
        %s167 = scalar_lea.sflag [#allocation6], %s166
        %s168 = sand.u32 %s56, 1
        %s169 = smul.addr %s168, 4
        %s170 = scalar_lea.vmem [#allocation5], %s169
        // Predicated region
        $region33: #{tpu_custom_call.1} parent=27 // pred_check
          %p171 = pneg %p69
        $region34: #{tpu_custom_call.1} parent=27 // pred_check_branch
          %173 = sbr.rel (%p171) target = $region36
        $region35: #{tpu_custom_call.1} parent=27 // pred_region
          %174 = dma.done %s167, 64
        $region36: #{tpu_custom_call.1} parent=27 // pred_fallthru
          _
        %s175 = sand.u32 %s30, 1
        %s176 = scalar_lea.sflag [#allocation3], %s175
        %s177 = sand.u32 %s30, 1
        %s178 = smul.addr %s177, 4
        %s179 = scalar_lea.vmem [#allocation2], %s178
        %p180 = pneg %p43
        %p181 = pneg %p40
        %s182 = sand.u32 %s56, 1
        %s183 = scalar_lea.sflag [#allocation6], %s182
        %s184 = sand.u32 %s56, 1
        %s185 = smul.addr %s184, 4
        %s186 = scalar_lea.vmem [#allocation5], %s185
        %p187 = pneg %p69
        %p188 = pneg %p66
        %p189 = pneg %p95
        %p190 = pneg %p92
        %s191 = sand.u32 %s82, 1
        %s192 = scalar_lea.sflag [#allocation4], %s191
        %s193 = sand.u32 %s82, 1
        %s194 = smul.addr %s193, 16
        %s195 = scalar_lea.vmem [#allocation7], %s194
        %v196 = vld [vmem:[%s170] sm:$0xf]
        %v197 = vld [vmem:[%s161] sm:$0x1]
        %v198 = vlaneseq
        %v199 = vshrl.u32 %v198, 7
        %v200 = vsub.s32 0, %v199
        %v201 = vrot.slane %v197, %v200
        %v202 = vadd.f32 %v201, %v196
        %vm203 = vcmask 257024
        %204 = vst.msk [vmem:[%s195] sm:$0xf] %vm203, %v202
        %v205 = vld [vmem:[%s161 + $0x1] sm:$0x1]
        %v206 = vlaneseq
        %v207 = vshrl.u32 %v206, 7
        %v208 = vsub.s32 0, %v207
        %v209 = vrot.slane %v205, %v208
        %v210 = vadd.f32 %v209, %v196
        %211 = vst.msk [vmem:[%s195 + $0x4] sm:$0xf] %vm203, %v210
        %v212 = vld [vmem:[%s161 + $0x2] sm:$0x1]
        %v213 = vlaneseq
        %v214 = vshrl.u32 %v213, 7
        %v215 = vsub.s32 0, %v214
        %v216 = vrot.slane %v212, %v215
        %v217 = vadd.f32 %v216, %v196
        %218 = vst.msk [vmem:[%s195 + $0x8] sm:$0xf] %vm203, %v217
        %v219 = vld [vmem:[%s161 + $0x3] sm:$0x1]
        %v220 = vlaneseq
        %v221 = vshrl.u32 %v220, 7
        %v222 = vsub.s32 0, %v221
        %v223 = vrot.slane %v219, %v222
        %v224 = vadd.f32 %v223, %v196
        %225 = vst.msk [vmem:[%s195 + $0xc] sm:$0xf] %vm203, %v224
        %s226 = sand.u32 %s82, 1
        %s227 = scalar_lea.sflag [#allocation4], %s226
        %s228 = sand.u32 %s82, 1
        %s229 = smul.addr %s228, 16
        %s230 = scalar_lea.vmem [#allocation7], %s229
        // Predicated region
        $region37: #{tpu_custom_call.1} parent=27 // pred_check
          %p231 = pneg %p92
        $region38: #{tpu_custom_call.1} parent=27 // pred_check_branch
          %233 = sbr.rel (%p231) target = $region40
        $region39: #{tpu_custom_call.1} parent=27 // pred_region
          %s235 = ssub.s32 256, 256
          %236 = vsyncadd %s227, %s235
          %s237 = smul.addr %s22, 2
          %s238 = smul.addr %s237, 128
          %s239 = scalar_lea.hbm %s2, %s238
          %s240 = sshll.u32 %s230, 4
          %s241 = int_to_ptr.vmem [resolvable:$true] %s240
          %246 = dma.vmem_to_hbm [thread:$0]  %s241, 256, %s239, %s227, 128, 128, 8
        $region40: #{tpu_custom_call.1} parent=27 // pred_fallthru
          _
      $region28: #{tpu_custom_call.1} parent=5 // pred_fallthru
        _
      %p247 = scmp.le.s32.totalorder 2, %s17
      // Predicated region
      $region41: #{tpu_custom_call.1} parent=5 // pred_check
        %p248 = pneg %p247
      $region42: #{tpu_custom_call.1} parent=5 // pred_check_branch
        %250 = sbr.rel (%p248) target = $region44
      $region43: #{tpu_custom_call.1} parent=5 // pred_region
        %s251 = ssub.s32 %s17, 2
        // Predicated region
        $region45: #{tpu_custom_call.1} parent=43 // pred_check
          %p252 = pneg %p98
        $region46: #{tpu_custom_call.1} parent=43 // pred_check_branch
          %254 = sbr.rel (%p252) target = $region48
        $region47: #{tpu_custom_call.1} parent=43 // pred_region
          %s255 = sand.u32 %s83, 1
          %s256 = scalar_lea.sflag [#allocation4], %s255
          %s257 = sand.u32 %s83, 1
          %s258 = smul.addr %s257, 16
          %s259 = scalar_lea.vmem [#allocation7], %s258
          %260 = dma.done %s256, 256
        $region48: #{tpu_custom_call.1} parent=43 // pred_fallthru
          _
      $region44: #{tpu_custom_call.1} parent=5 // pred_fallthru
        _
    $region6: #{tpu_custom_call.1} parent=1 // loop_footer
      %s21 = sadd.s32 1, %s17
    $region7: #{tpu_custom_call.1} parent=1 // loop_footer_branch
      %16 = sbr.rel target = $region3
    $region8: #{tpu_custom_call.1} parent=1 // loop_exit
      _
    %261 = vsyncpa [#allocation3], 1
    %s262 = scalar_lea.sflag [#allocation3], 1
    %263 = vsyncpa %s262, 1
    %264 = vsyncpa [#allocation6], 1
    %s265 = scalar_lea.sflag [#allocation6], 1
    %266 = vsyncpa %s265, 1
    %267 = vsyncpa [#allocation4], 1
    %s268 = scalar_lea.sflag [#allocation4], 1
    %269 = vsyncpa %s268, 1

</llo_original>
